<compile_context>
chip_gen: v5e
topology: v5e:2x2
jax: 0.10.0
libtpu: 0.0.40
codegen_flags: <defaults>
</compile_context>

<pallas_src>
import jax
import jax.numpy as jnp
from jax.experimental import pallas as pl
from jax.experimental.pallas import tpu as pltpu


# --------------------------------------------------------------------------
# Pallas kernel: fused final_layer (4 x Linear -> ReLU), all f32
# --------------------------------------------------------------------------
def _final_layer_kernel(x_ref,
                        w1_ref, b1_ref,
                        w2_ref, b2_ref,
                        w3_ref, b3_ref,
                        w4_ref, b4_ref,
                        out_ref):
    h = x_ref[...]                                                   # [tb, D] f32
    h = jnp.maximum(
        jnp.dot(h, w1_ref[...], preferred_element_type=jnp.float32) + b1_ref[...], 0.0)
    h = jnp.maximum(
        jnp.dot(h, w2_ref[...], preferred_element_type=jnp.float32) + b2_ref[...], 0.0)
    h = jnp.maximum(
        jnp.dot(h, w3_ref[...], preferred_element_type=jnp.float32) + b3_ref[...], 0.0)
    h = jnp.maximum(
        jnp.dot(h, w4_ref[...], preferred_element_type=jnp.float32) + b4_ref[...], 0.0)
    out_ref[...] = h.astype(out_ref.dtype)


# --------------------------------------------------------------------------
# Tiling helpers
# --------------------------------------------------------------------------
def _num_tensorcores():
    """1 TC per chip on v5e/v6e, 2 on v4/v5p/v7x.  Defaults to 1."""
    try:
        kind = jax.devices()[0].device_kind.lower()
    except Exception:  # pragma: no cover
        return 1
    if "v7" in kind or "v5p" in kind or ("v4" in kind and "v4i" not in kind):
        return 2
    return 1


def _pick_tile_b(batch, num_cores=1, cap=2048):
    """Largest multiple-of-8 divisor of `batch` <= cap.

    Single-TC chips: prefer grid=1 (one big tile, no per-step overhead).
    Multi-TC chips: keep the step count an even multiple of num_cores so both
    cores get a full share of the "parallel" grid.
    Falls back to the full batch (full-extent block is always legal)."""
    limit = min(batch, cap)
    if num_cores > 1 and batch >= 2 * num_cores * 8:
        limit = min(limit, batch // num_cores)
    for cand in range(limit, 7, -1):
        if batch % cand or cand % 8:
            continue
        if num_cores > 1 and (batch // cand) % num_cores:
            continue
        return cand
    return batch


# --------------------------------------------------------------------------
# Fused final_layer forward
# --------------------------------------------------------------------------
def final_layer_forward(x, params, *, tile_b=None):
    """Fused Pallas forward of the VAE_plus_bias `final_layer`.

    x: [B, D] float32.  Weights stored [in, out] (transpose of nn.Linear),
    biases [1, out], all float32.
    """
    B, D = x.shape
    h1 = params["w1"].shape[1]
    h2 = params["w2"].shape[1]

    if tile_b is None:
        tile_b = _pick_tile_b(B, _num_tensorcores())
    assert B % tile_b == 0, "batch must be divisible by tile_b"
    grid = (B // tile_b,)

    args = (x,
            params["w1"], params["b1"],
            params["w2"], params["b2"],
            params["w3"], params["b3"],
            params["w4"], params["b4"])

    # Weights/biases replicated to every grid step (constant block index) so
    # they are DMA'd once and stay resident in VMEM.
    def rep(arr):
        return pl.BlockSpec(arr.shape, lambda i: (0, 0))

    weight_elems = D * h1 + h1 * h2 + h2 * h1 + h1 * D
    bias_elems = h1 + h2 + h1 + D
    flops = 2 * B * weight_elems
    bytes_accessed = (B * D * 4            # x (f32, read directly, no pre-cast)
                      + B * D * 4          # out (f32)
                      + (weight_elems + bias_elems) * 4)

    # VMEM budget check: double-buffered x/out blocks + resident weights +
    # f32 intermediates.  Bump the scoped limit only if we would exceed the
    # ~32 MiB default (matters for large D, especially on v7x's 64 MiB VMEM).
    vmem_est = (2 * 2 * tile_b * D * 4
                + 2 * (weight_elems + bias_elems) * 4
                + tile_b * (h1 + h2 + h1 + D) * 4)
    compiler_kwargs = dict(dimension_semantics=("parallel",))
    if vmem_est > 30 * 1024 * 1024:
        compiler_kwargs["vmem_limit_bytes"] = min(int(vmem_est * 1.25),
                                                  110 * 1024 * 1024)

    out = pl.pallas_call(
        _final_layer_kernel,
        out_shape=jax.ShapeDtypeStruct((B, D), x.dtype),
        grid_spec=pltpu.PrefetchScalarGridSpec(
            num_scalar_prefetch=0,
            grid=grid,
            in_specs=[pl.BlockSpec((tile_b, D), lambda i: (i, 0))]   # x tile
                     + [rep(a) for a in args[1:]],
            out_specs=pl.BlockSpec((tile_b, D), lambda i: (i, 0)),
        ),
        compiler_params=pltpu.CompilerParams(**compiler_kwargs),
        cost_estimate=pl.CostEstimate(
            flops=flops, transcendentals=0, bytes_accessed=bytes_accessed),
    )(*args)
    return out


# --------------------------------------------------------------------------
# Stand-in for the injected pretrained model (architecture not in the spec)
# --------------------------------------------------------------------------
def init_pretrained_params(key, input_dim, hidden_dim, latent_dim,
                           dtype=jnp.float32):
    def lin(k, fi, fo):
        kw, kb = jax.random.split(k)
        bound = 1.0 / (fi ** 0.5)
        return (jax.random.uniform(kw, (fi, fo), dtype, -bound, bound),
                jax.random.uniform(kb, (1, fo), dtype, -bound, bound))

    k = jax.random.split(key, 5)
    p = {}
    p["enc_w"], p["enc_b"] = lin(k[0], input_dim, hidden_dim)
    p["mu_w"], p["mu_b"] = lin(k[1], hidden_dim, latent_dim)
    p["lv_w"], p["lv_b"] = lin(k[2], hidden_dim, latent_dim)
    p["dec1_w"], p["dec1_b"] = lin(k[3], latent_dim, hidden_dim)
    p["dec2_w"], p["dec2_b"] = lin(k[4], hidden_dim, input_dim)
    return p


def pretrained_forward(x, p):
    h = jnp.maximum(x @ p["enc_w"] + p["enc_b"], 0.0)
    mu = h @ p["mu_w"] + p["mu_b"]
    log_var = h @ p["lv_w"] + p["lv_b"]
    z = mu                                   # deterministic stand-in
    hd = jnp.maximum(z @ p["dec1_w"] + p["dec1_b"], 0.0)
    reconstruction = hd @ p["dec2_w"] + p["dec2_b"]
    return reconstruction, mu, log_var, z


# --------------------------------------------------------------------------
# VAE_plus_bias forward
# --------------------------------------------------------------------------
@jax.jit
def vae_plus_bias_forward(x, pretrained_params, final_layer_params):
    reconstruction, mu, log_var, z = pretrained_forward(x, pretrained_params)
    reconstruction = final_layer_forward(reconstruction, final_layer_params)
    return reconstruction, mu, log_var, z


# --------------------------------------------------------------------------
# Init / reference
# --------------------------------------------------------------------------
def init_final_layer_params(key, input_dim, dtype=jnp.float32):
    """nn.Linear init U(-1/sqrt(fan_in), 1/sqrt(fan_in)).
    Weights stored [in, out]; biases [1, out]."""
    h1, h2 = input_dim // 4, input_dim // 16
    dims = [(input_dim, h1), (h1, h2), (h2, h1), (h1, input_dim)]
    keys = jax.random.split(key, len(dims))
    params = {}
    for idx, ((fi, fo), k) in enumerate(zip(dims, keys), start=1):
        kw, kb = jax.random.split(k)
        bound = 1.0 / (fi ** 0.5)
        params[f"w{idx}"] = jax.random.uniform(kw, (fi, fo), dtype, -bound, bound)
        params[f"b{idx}"] = jax.random.uniform(kb, (1, fo), dtype, -bound, bound)
    return params


def final_layer_ref(x, p):
    """Pure-JAX f32 reference (matches the PyTorch f32 nn.Linear semantics)."""
    h = x
    for i in range(1, 5):
        h = jnp.dot(h, p[f"w{i}"], preferred_element_type=jnp.float32) + p[f"b{i}"]
        h = jnp.maximum(h, 0.0)
    return h.astype(x.dtype)


# --------------------------------------------------------------------------
if __name__ == "__main__":
    # input_dim=256 -> hidden dims 64 and 16; batch small but a multiple of 8.
    batch, input_dim = 64, 256
    hidden_dim, latent_dim = 64, 32

    key = jax.random.PRNGKey(0)
    kx, kpre, kfl = jax.random.split(key, 3)
    x = jax.random.normal(kx, (batch, input_dim), jnp.float32)
    pre_params = init_pretrained_params(kpre, input_dim, hidden_dim, latent_dim)
    fl_params = init_final_layer_params(kfl, input_dim)

    rec, mu, log_var, z = vae_plus_bias_forward(x, pre_params, fl_params)
    jax.block_until_ready((rec, mu, log_var, z))

    # ---- correctness check vs. pure f32 reference ----
    rec_pre, mu_ref, lv_ref, z_ref = pretrained_forward(x, pre_params)
    rec_ref = final_layer_ref(rec_pre, fl_params)

    assert rec.shape == (batch, input_dim)
    assert mu.shape == (batch, latent_dim)
    assert log_var.shape == (batch, latent_dim)
    assert z.shape == (batch, latent_dim)
    assert jnp.allclose(mu, mu_ref, atol=1e-4, rtol=1e-4)
    assert jnp.allclose(log_var, lv_ref, atol=1e-4, rtol=1e-4)
    assert jnp.allclose(z, z_ref, atol=1e-4, rtol=1e-4)
    assert jnp.allclose(rec, rec_ref, atol=2e-3, rtol=2e-3), float(
        jnp.max(jnp.abs(rec - rec_ref)))

    print("KERNEL_OK")
</pallas_src>

<mosaic_0001>
module attributes {stable_mosaic.version = 11 : i64} {
  func.func @_final_layer_kernel(%arg0: i32, %arg1: memref<64x256xf32, #tpu.memory_space<vmem>>, %arg2: memref<256x64xf32, #tpu.memory_space<vmem>>, %arg3: memref<1x64xf32, #tpu.memory_space<vmem>>, %arg4: memref<64x16xf32, #tpu.memory_space<vmem>>, %arg5: memref<1x16xf32, #tpu.memory_space<vmem>>, %arg6: memref<16x64xf32, #tpu.memory_space<vmem>>, %arg7: memref<1x64xf32, #tpu.memory_space<vmem>>, %arg8: memref<64x256xf32, #tpu.memory_space<vmem>>, %arg9: memref<1x256xf32, #tpu.memory_space<vmem>>, %arg10: memref<64x256xf32, #tpu.memory_space<vmem>>) attributes {dimension_semantics = [#tpu.dimension_semantics<parallel>], iteration_bounds = array<i64: 1>, scalar_prefetch = 0 : i64, scratch_operands = 0 : i64, tpu.core_type = #tpu.core_type<tc>, window_params = [{transform_indices = @transform_0, window_bounds = array<i64: 64, 256>}, {pipeline_mode = #tpu.pipeline_mode<synchronous>, transform_indices = @transform_1, window_bounds = array<i64: 256, 64>}, {pipeline_mode = #tpu.pipeline_mode<synchronous>, transform_indices = @transform_2, window_bounds = array<i64: 1, 64>}, {pipeline_mode = #tpu.pipeline_mode<synchronous>, transform_indices = @transform_3, window_bounds = array<i64: 64, 16>}, {pipeline_mode = #tpu.pipeline_mode<synchronous>, transform_indices = @transform_4, window_bounds = array<i64: 1, 16>}, {pipeline_mode = #tpu.pipeline_mode<synchronous>, transform_indices = @transform_5, window_bounds = array<i64: 16, 64>}, {pipeline_mode = #tpu.pipeline_mode<synchronous>, transform_indices = @transform_6, window_bounds = array<i64: 1, 64>}, {pipeline_mode = #tpu.pipeline_mode<synchronous>, transform_indices = @transform_7, window_bounds = array<i64: 64, 256>}, {pipeline_mode = #tpu.pipeline_mode<synchronous>, transform_indices = @transform_8, window_bounds = array<i64: 1, 256>}, {transform_indices = @transform_9, window_bounds = array<i64: 64, 256>}]} {
    %c0 = arith.constant 0 : index
    %c0_0 = arith.constant 0 : index
    %0 = vector.load %arg1[%c0, %c0_0] : memref<64x256xf32, #tpu.memory_space<vmem>>, vector<64x256xf32>
    %c0_1 = arith.constant 0 : index
    %c0_2 = arith.constant 0 : index
    %1 = vector.load %arg2[%c0_1, %c0_2] : memref<256x64xf32, #tpu.memory_space<vmem>>, vector<256x64xf32>
    %cst = arith.constant dense<0.000000e+00> : vector<64x64xf32>
    %2 = tpu.matmul %0, %1, %cst {dimension_numbers = #tpu.dot_dimension_numbers<[1], [0], [0], [1], [0, 0, 1, 1], [], []>} : vector<64x256xf32>, vector<256x64xf32>, vector<64x64xf32> -> vector<64x64xf32>
    %c0_3 = arith.constant 0 : index
    %c0_4 = arith.constant 0 : index
    %3 = vector.load %arg3[%c0_3, %c0_4] : memref<1x64xf32, #tpu.memory_space<vmem>>, vector<1x64xf32>
    %4 = vector.broadcast %3 : vector<1x64xf32> to vector<64x64xf32>
    %5 = arith.addf %2, %4 : vector<64x64xf32>
    %cst_5 = arith.constant 0.000000e+00 : f32
    %6 = vector.broadcast %cst_5 : f32 to vector<64x64xf32>
    %7 = arith.maximumf %5, %6 : vector<64x64xf32>
    %c0_6 = arith.constant 0 : index
    %c0_7 = arith.constant 0 : index
    %8 = vector.load %arg4[%c0_6, %c0_7] : memref<64x16xf32, #tpu.memory_space<vmem>>, vector<64x16xf32>
    %cst_8 = arith.constant dense<0.000000e+00> : vector<64x16xf32>
    %9 = tpu.matmul %7, %8, %cst_8 {dimension_numbers = #tpu.dot_dimension_numbers<[1], [0], [0], [1], [0, 0, 1, 1], [], []>} : vector<64x64xf32>, vector<64x16xf32>, vector<64x16xf32> -> vector<64x16xf32>
    %c0_9 = arith.constant 0 : index
    %c0_10 = arith.constant 0 : index
    %10 = vector.load %arg5[%c0_9, %c0_10] : memref<1x16xf32, #tpu.memory_space<vmem>>, vector<1x16xf32>
    %11 = vector.broadcast %10 : vector<1x16xf32> to vector<64x16xf32>
    %12 = arith.addf %9, %11 : vector<64x16xf32>
    %cst_11 = arith.constant 0.000000e+00 : f32
    %13 = vector.broadcast %cst_11 : f32 to vector<64x16xf32>
    %14 = arith.maximumf %12, %13 : vector<64x16xf32>
    %c0_12 = arith.constant 0 : index
    %c0_13 = arith.constant 0 : index
    %15 = vector.load %arg6[%c0_12, %c0_13] : memref<16x64xf32, #tpu.memory_space<vmem>>, vector<16x64xf32>
    %cst_14 = arith.constant dense<0.000000e+00> : vector<64x64xf32>
    %16 = tpu.matmul %14, %15, %cst_14 {dimension_numbers = #tpu.dot_dimension_numbers<[1], [0], [0], [1], [0, 0, 1, 1], [], []>} : vector<64x16xf32>, vector<16x64xf32>, vector<64x64xf32> -> vector<64x64xf32>
    %c0_15 = arith.constant 0 : index
    %c0_16 = arith.constant 0 : index
    %17 = vector.load %arg7[%c0_15, %c0_16] : memref<1x64xf32, #tpu.memory_space<vmem>>, vector<1x64xf32>
    %18 = vector.broadcast %17 : vector<1x64xf32> to vector<64x64xf32>
    %19 = arith.addf %16, %18 : vector<64x64xf32>
    %cst_17 = arith.constant 0.000000e+00 : f32
    %20 = vector.broadcast %cst_17 : f32 to vector<64x64xf32>
    %21 = arith.maximumf %19, %20 : vector<64x64xf32>
    %c0_18 = arith.constant 0 : index
    %c0_19 = arith.constant 0 : index
    %22 = vector.load %arg8[%c0_18, %c0_19] : memref<64x256xf32, #tpu.memory_space<vmem>>, vector<64x256xf32>
    %cst_20 = arith.constant dense<0.000000e+00> : vector<64x256xf32>
    %23 = tpu.matmul %21, %22, %cst_20 {dimension_numbers = #tpu.dot_dimension_numbers<[1], [0], [0], [1], [0, 0, 1, 1], [], []>} : vector<64x64xf32>, vector<64x256xf32>, vector<64x256xf32> -> vector<64x256xf32>
    %c0_21 = arith.constant 0 : index
    %c0_22 = arith.constant 0 : index
    %24 = vector.load %arg9[%c0_21, %c0_22] : memref<1x256xf32, #tpu.memory_space<vmem>>, vector<1x256xf32>
    %25 = vector.broadcast %24 : vector<1x256xf32> to vector<64x256xf32>
    %26 = arith.addf %23, %25 : vector<64x256xf32>
    %cst_23 = arith.constant 0.000000e+00 : f32
    %27 = vector.broadcast %cst_23 : f32 to vector<64x256xf32>
    %28 = arith.maximumf %26, %27 : vector<64x256xf32>
    %c0_24 = arith.constant 0 : index
    %c0_25 = arith.constant 0 : index
    %29 = vector.load %arg10[%c0_24, %c0_25] : memref<64x256xf32, #tpu.memory_space<vmem>>, vector<64x256xf32>
    tpu.vector_store %arg10[%c0_24, %c0_25], %28 {strides = array<i32>} : memref<64x256xf32, #tpu.memory_space<vmem>>, vector<64x256xf32>,
    return
  }
  func.func @transform_0(%arg0: i32) -> (i32, i32) {
    %c0_i32 = arith.constant 0 : i32
    %c0_i32_0 = arith.constant 0 : i32
    return %arg0, %c0_i32 : i32, i32
  }
  func.func @transform_1(%arg0: i32) -> (i32, i32) {
    %c0_i32 = arith.constant 0 : i32
    %c0_i32_0 = arith.constant 0 : i32
    %c0_i32_1 = arith.constant 0 : i32
    return %c0_i32, %c0_i32_0 : i32, i32
  }
  func.func @transform_2(%arg0: i32) -> (i32, i32) {
    %c0_i32 = arith.constant 0 : i32
    %c0_i32_0 = arith.constant 0 : i32
    %c0_i32_1 = arith.constant 0 : i32
    return %c0_i32, %c0_i32_0 : i32, i32
  }
  func.func @transform_3(%arg0: i32) -> (i32, i32) {
    %c0_i32 = arith.constant 0 : i32
    %c0_i32_0 = arith.constant 0 : i32
    %c0_i32_1 = arith.constant 0 : i32
    return %c0_i32, %c0_i32_0 : i32, i32
  }
  func.func @transform_4(%arg0: i32) -> (i32, i32) {
    %c0_i32 = arith.constant 0 : i32
    %c0_i32_0 = arith.constant 0 : i32
    %c0_i32_1 = arith.constant 0 : i32
    return %c0_i32, %c0_i32_0 : i32, i32
  }
  func.func @transform_5(%arg0: i32) -> (i32, i32) {
    %c0_i32 = arith.constant 0 : i32
    %c0_i32_0 = arith.constant 0 : i32
    %c0_i32_1 = arith.constant 0 : i32
    return %c0_i32, %c0_i32_0 : i32, i32
  }
  func.func @transform_6(%arg0: i32) -> (i32, i32) {
    %c0_i32 = arith.constant 0 : i32
    %c0_i32_0 = arith.constant 0 : i32
    %c0_i32_1 = arith.constant 0 : i32
    return %c0_i32, %c0_i32_0 : i32, i32
  }
  func.func @transform_7(%arg0: i32) -> (i32, i32) {
    %c0_i32 = arith.constant 0 : i32
    %c0_i32_0 = arith.constant 0 : i32
    %c0_i32_1 = arith.constant 0 : i32
    return %c0_i32, %c0_i32_0 : i32, i32
  }
  func.func @transform_8(%arg0: i32) -> (i32, i32) {
    %c0_i32 = arith.constant 0 : i32
    %c0_i32_0 = arith.constant 0 : i32
    %c0_i32_1 = arith.constant 0 : i32
    return %c0_i32, %c0_i32_0 : i32, i32
  }
  func.func @transform_9(%arg0: i32) -> (i32, i32) {
    %c0_i32 = arith.constant 0 : i32
    %c0_i32_0 = arith.constant 0 : i32
    return %arg0, %c0_i32 : i32, i32
  }
}

</mosaic_0001>

<llo_original>
// kernel: vae_plus_bias_forward.1
$region0: #{vae_plus_bias_forward.1}
  #allocation0 [shape = 'u32[]', space=smem, size = 0x4, offset = 0x4, fixed_abs, tag = 'smem constant byte address 0x4 - core index']
  #allocation1 [shape = 'u32[72,128]{1,0:T(1,128)}', space=vmem, size = 0x9000, scoped, tag = 'internal scratch']
  %s0 = inlined_call_operand.vmem [shape: f32[64,256], index: 0, kind: input, shape index: {}]
  %s1 = inlined_call_operand.vmem [shape: f32[256,64], index: 1, kind: input, shape index: {}]
  %s2 = inlined_call_operand.vmem [shape: f32[1,64], index: 2, kind: input, shape index: {}]
  %s3 = inlined_call_operand.vmem [shape: f32[64,16], index: 3, kind: input, shape index: {}]
  %s4 = inlined_call_operand.vmem [shape: f32[1,16], index: 4, kind: input, shape index: {}]
  %s5 = inlined_call_operand.vmem [shape: f32[16,64], index: 5, kind: input, shape index: {}]
  %s6 = inlined_call_operand.vmem [shape: f32[1,64], index: 6, kind: input, shape index: {}]
  %s7 = inlined_call_operand.vmem [shape: f32[64,256], index: 7, kind: input, shape index: {}]
  %s8 = inlined_call_operand.vmem [shape: f32[1,256], index: 8, kind: input, shape index: {}]
  %s9 = inlined_call_operand.hbm [shape: f32[64,256], index: 9, kind: output, shape index: {}]
  %s10 = sld [smem:[#allocation0]]
  $region46: #{vae_plus_bias_forward.1} parent=0
    _
  %s12 = ssub.s32 1, %s10
  %s13 = scalar_select 0, %s12, %s10
  $region1: #{vae_plus_bias_forward.1} parent=0
    #allocation2 [shape = 'u8[65536]{0}', space=vmem, size = 0x10000, scoped, tag = 'output window, operand 0, single buffered']
    #allocation3 [shape = 's32[1]{0}', space=sflag, size = 0x4, scoped, tag = 'scoped memory for vae_plus_bias_forward.1']
    %14 = vsyncpa [#allocation3], 0
    // Predicated region
    $region2: #{vae_plus_bias_forward.1} parent=1 // pred_check
      _
    $region3: #{vae_plus_bias_forward.1} parent=1 // pred_check_branch
      %16 = sbr.rel (0) target = $region5
    $region4: #{vae_plus_bias_forward.1} parent=1 // pred_region
      _
    $region5: #{vae_plus_bias_forward.1} parent=1 // pred_fallthru
      _
    // Predicated region
    $region6: #{vae_plus_bias_forward.1} parent=1 // pred_check
      _
    $region7: #{vae_plus_bias_forward.1} parent=1 // pred_check_branch
      %18 = sbr.rel (0) target = $region9
    $region8: #{vae_plus_bias_forward.1} parent=1 // pred_region
      _
    $region9: #{vae_plus_bias_forward.1} parent=1 // pred_fallthru
      _
    // Predicated region
    $region10: #{vae_plus_bias_forward.1} parent=1 // pred_check
      _
    $region11: #{vae_plus_bias_forward.1} parent=1 // pred_check_branch
      %20 = sbr.rel (0) target = $region13
    $region12: #{vae_plus_bias_forward.1} parent=1 // pred_region
      _
    $region13: #{vae_plus_bias_forward.1} parent=1 // pred_fallthru
      _
    // Predicated region
    $region14: #{vae_plus_bias_forward.1} parent=1 // pred_check
      _
    $region15: #{vae_plus_bias_forward.1} parent=1 // pred_check_branch
      %22 = sbr.rel (0) target = $region17
    $region16: #{vae_plus_bias_forward.1} parent=1 // pred_region
      _
    $region17: #{vae_plus_bias_forward.1} parent=1 // pred_fallthru
      _
    // Predicated region
    $region18: #{vae_plus_bias_forward.1} parent=1 // pred_check
      _
    $region19: #{vae_plus_bias_forward.1} parent=1 // pred_check_branch
      %24 = sbr.rel (0) target = $region21
    $region20: #{vae_plus_bias_forward.1} parent=1 // pred_region
      _
    $region21: #{vae_plus_bias_forward.1} parent=1 // pred_fallthru
      _
    // Predicated region
    $region22: #{vae_plus_bias_forward.1} parent=1 // pred_check
      _
    $region23: #{vae_plus_bias_forward.1} parent=1 // pred_check_branch
      %26 = sbr.rel (0) target = $region25
    $region24: #{vae_plus_bias_forward.1} parent=1 // pred_region
      _
    $region25: #{vae_plus_bias_forward.1} parent=1 // pred_fallthru
      _
    // Predicated region
    $region26: #{vae_plus_bias_forward.1} parent=1 // pred_check
      _
    $region27: #{vae_plus_bias_forward.1} parent=1 // pred_check_branch
      %28 = sbr.rel (0) target = $region29
    $region28: #{vae_plus_bias_forward.1} parent=1 // pred_region
      _
    $region29: #{vae_plus_bias_forward.1} parent=1 // pred_fallthru
      _
    // Predicated region
    $region30: #{vae_plus_bias_forward.1} parent=1 // pred_check
      _
    $region31: #{vae_plus_bias_forward.1} parent=1 // pred_check_branch
      %30 = sbr.rel (0) target = $region33
    $region32: #{vae_plus_bias_forward.1} parent=1 // pred_region
      _
    $region33: #{vae_plus_bias_forward.1} parent=1 // pred_fallthru
      _
    // Predicated region
    $region34: #{vae_plus_bias_forward.1} parent=1 // pred_check
      _
    $region35: #{vae_plus_bias_forward.1} parent=1 // pred_check_branch
      %32 = sbr.rel (0) target = $region37
    $region36: #{vae_plus_bias_forward.1} parent=1 // pred_region
      _
    $region37: #{vae_plus_bias_forward.1} parent=1 // pred_fallthru
      _
    %v33 = vld [vmem:[%s0] sm:$0xff]
    %v34 = vld [vmem:[%s0 + $0x8] sm:$0xff]
    %v35 = vld [vmem:[%s0 + $0x10] sm:$0xff]
    %v36 = vld [vmem:[%s0 + $0x18] sm:$0xff]
    %v37 = vld [vmem:[%s0 + $0x20] sm:$0xff]
    %v38 = vld [vmem:[%s0 + $0x28] sm:$0xff]
    %v39 = vld [vmem:[%s0 + $0x30] sm:$0xff]
    %v40 = vld [vmem:[%s0 + $0x38] sm:$0xff]
    %v41 = vld [vmem:[%s0 + $0x40] sm:$0xff]
    %v42 = vld [vmem:[%s0 + $0x48] sm:$0xff]
    %v43 = vld [vmem:[%s0 + $0x50] sm:$0xff]
    %v44 = vld [vmem:[%s0 + $0x58] sm:$0xff]
    %v45 = vld [vmem:[%s0 + $0x60] sm:$0xff]
    %v46 = vld [vmem:[%s0 + $0x68] sm:$0xff]
    %v47 = vld [vmem:[%s0 + $0x70] sm:$0xff]
    %v48 = vld [vmem:[%s0 + $0x78] sm:$0xff]
    %v49 = vld [vmem:[%s1] sm:$0xff]
    %v50 = vld [vmem:[%s1 + $0x8] sm:$0xff]
    %v51 = vld [vmem:[%s1 + $0x10] sm:$0xff]
    %v52 = vld [vmem:[%s1 + $0x18] sm:$0xff]
    %v53 = vld [vmem:[%s1 + $0x20] sm:$0xff]
    %v54 = vld [vmem:[%s1 + $0x28] sm:$0xff]
    %v55 = vld [vmem:[%s1 + $0x30] sm:$0xff]
    %v56 = vld [vmem:[%s1 + $0x38] sm:$0xff]
    %v57 = vld [vmem:[%s1 + $0x40] sm:$0xff]
    %v58 = vld [vmem:[%s1 + $0x48] sm:$0xff]
    %v59 = vld [vmem:[%s1 + $0x50] sm:$0xff]
    %v60 = vld [vmem:[%s1 + $0x58] sm:$0xff]
    %v61 = vld [vmem:[%s1 + $0x60] sm:$0xff]
    %v62 = vld [vmem:[%s1 + $0x68] sm:$0xff]
    %v63 = vld [vmem:[%s1 + $0x70] sm:$0xff]
    %v64 = vld [vmem:[%s1 + $0x78] sm:$0xff]
    %v65 = vld [vmem:[%s1 + $0x80] sm:$0xff]
    %v66 = vld [vmem:[%s1 + $0x88] sm:$0xff]
    %v67 = vld [vmem:[%s1 + $0x90] sm:$0xff]
    %v68 = vld [vmem:[%s1 + $0x98] sm:$0xff]
    %v69 = vld [vmem:[%s1 + $0xa0] sm:$0xff]
    %v70 = vld [vmem:[%s1 + $0xa8] sm:$0xff]
    %v71 = vld [vmem:[%s1 + $0xb0] sm:$0xff]
    %v72 = vld [vmem:[%s1 + $0xb8] sm:$0xff]
    %v73 = vld [vmem:[%s1 + $0xc0] sm:$0xff]
    %v74 = vld [vmem:[%s1 + $0xc8] sm:$0xff]
    %v75 = vld [vmem:[%s1 + $0xd0] sm:$0xff]
    %v76 = vld [vmem:[%s1 + $0xd8] sm:$0xff]
    %v77 = vld [vmem:[%s1 + $0xe0] sm:$0xff]
    %v78 = vld [vmem:[%s1 + $0xe8] sm:$0xff]
    %v79 = vld [vmem:[%s1 + $0xf0] sm:$0xff]
    %v80 = vld [vmem:[%s1 + $0xf8] sm:$0xff]
    %v81 = vld [vmem:[%s2] sm:$0x1]
    %v83 = vperm.slane %v81, 0
    %85 = vmatpush.msra.mxu0 %v64
    %86 = vmatpush.msra.mxu0 %v63
    %87 = vmatpush.msra.mxu0 %v62
    %88 = vmatpush.msra.mxu0 %v61
    %89 = vmatpush.msra.mxu0 %v60
    %90 = vmatpush.msra.mxu0 %v59
    %91 = vmatpush.msra.mxu0 %v58
    %92 = vmatpush.msra.mxu0 %v57
    %93 = vmatpush.msra.mxu0 %v56
    %94 = vmatpush.msra.mxu0 %v55
    %95 = vmatpush.msra.mxu0 %v54
    %96 = vmatpush.msra.mxu0 %v53
    %97 = vmatpush.msra.mxu0 %v52
    %98 = vmatpush.msra.mxu0 %v51
    %99 = vmatpush.msra.mxu0 %v50
    %100 = vmatpush.msra.mxu0 %v49
    %101 = vmatmul.f32.gmra.mxu0 %v33
    %v102 = vpop.f32.mrf.mxu0
    %v103 = vadd.f32 %v83, %v102
    %104 = vmatmul.f32.gmra.mxu0 %v35
    %v105 = vpop.f32.mrf.mxu0
    %v106 = vadd.f32 %v83, %v105
    %107 = vmatmul.f32.gmra.mxu0 %v37
    %v108 = vpop.f32.mrf.mxu0
    %v109 = vadd.f32 %v83, %v108
    %110 = vmatmul.f32.gmra.mxu0 %v39
    %v111 = vpop.f32.mrf.mxu0
    %v112 = vadd.f32 %v83, %v111
    %113 = vmatmul.f32.gmra.mxu0 %v41
    %v114 = vpop.f32.mrf.mxu0
    %v115 = vadd.f32 %v83, %v114
    %116 = vmatmul.f32.gmra.mxu0 %v43
    %v117 = vpop.f32.mrf.mxu0
    %v118 = vadd.f32 %v83, %v117
    %119 = vmatmul.f32.gmra.mxu0 %v45
    %v120 = vpop.f32.mrf.mxu0
    %v121 = vadd.f32 %v83, %v120
    %122 = vmatmul.f32.gmra.mxu0 %v47
    %v123 = vpop.f32.mrf.mxu0
    %v124 = vadd.f32 %v83, %v123
    %125 = vdwg.mxu0
    %126 = vmatpush.msra.mxu0 %v80
    %127 = vmatpush.msra.mxu0 %v79
    %128 = vmatpush.msra.mxu0 %v78
    %129 = vmatpush.msra.mxu0 %v77
    %130 = vmatpush.msra.mxu0 %v76
    %131 = vmatpush.msra.mxu0 %v75
    %132 = vmatpush.msra.mxu0 %v74
    %133 = vmatpush.msra.mxu0 %v73
    %134 = vmatpush.msra.mxu0 %v72
    %135 = vmatpush.msra.mxu0 %v71
    %136 = vmatpush.msra.mxu0 %v70
    %137 = vmatpush.msra.mxu0 %v69
    %138 = vmatpush.msra.mxu0 %v68
    %139 = vmatpush.msra.mxu0 %v67
    %140 = vmatpush.msra.mxu0 %v66
    %141 = vmatpush.msra.mxu0 %v65
    %142 = vmatmul.f32.gmra.mxu0 %v34
    %v143 = vpop.f32.mrf.mxu0
    %v144 = vadd.f32 %v103, %v143
    %145 = vmatmul.f32.gmra.mxu0 %v36
    %v146 = vpop.f32.mrf.mxu0
    %v147 = vadd.f32 %v106, %v146
    %148 = vmatmul.f32.gmra.mxu0 %v38
    %v149 = vpop.f32.mrf.mxu0
    %v150 = vadd.f32 %v109, %v149
    %151 = vmatmul.f32.gmra.mxu0 %v40
    %v152 = vpop.f32.mrf.mxu0
    %v153 = vadd.f32 %v112, %v152
    %154 = vmatmul.f32.gmra.mxu0 %v42
    %v155 = vpop.f32.mrf.mxu0
    %v156 = vadd.f32 %v115, %v155
    %157 = vmatmul.f32.gmra.mxu0 %v44
    %v158 = vpop.f32.mrf.mxu0
    %v159 = vadd.f32 %v118, %v158
    %160 = vmatmul.f32.gmra.mxu0 %v46
    %v161 = vpop.f32.mrf.mxu0
    %v162 = vadd.f32 %v121, %v161
    %163 = vmatmul.f32.gmra.mxu0 %v48
    %v164 = vpop.f32.mrf.mxu0
    %v165 = vadd.f32 %v124, %v164
    %166 = vdwg.mxu0
    %v167 = vmax.f32 %v144, 0.0
    %v168 = vmax.f32 %v147, 0.0
    %v169 = vmax.f32 %v150, 0.0
    %v170 = vmax.f32 %v153, 0.0
    %v171 = vmax.f32 %v156, 0.0
    %v172 = vmax.f32 %v159, 0.0
    %v173 = vmax.f32 %v162, 0.0
    %v174 = vmax.f32 %v165, 0.0
    %v175 = vld [vmem:[%s3] sm:$0xff]
    %v176 = vld [vmem:[%s3 + $0x8] sm:$0xff]
    %v177 = vld [vmem:[%s3 + $0x10] sm:$0xff]
    %v178 = vld [vmem:[%s3 + $0x18] sm:$0xff]
    %v179 = vld [vmem:[%s3 + $0x20] sm:$0xff]
    %v180 = vld [vmem:[%s3 + $0x28] sm:$0xff]
    %v181 = vld [vmem:[%s3 + $0x30] sm:$0xff]
    %v182 = vld [vmem:[%s3 + $0x38] sm:$0xff]
    %v183 = vld [vmem:[%s4] sm:$0x1]
    %v185 = vperm.slane %v183, 0
    %vm187 = vcmask 523264
    %v189 = vsel %vm187, %v167, 0
    %v192 = vsel %vm187, %v168, 0
    %v195 = vsel %vm187, %v169, 0
    %v198 = vsel %vm187, %v170, 0
    %v201 = vsel %vm187, %v171, 0
    %v204 = vsel %vm187, %v172, 0
    %v207 = vsel %vm187, %v173, 0
    %v210 = vsel %vm187, %v174, 0
    %212 = vmatpush.msra.mxu0 0.0
    %213 = vmatpush.msra.mxu0 0.0
    %214 = vmatpush.msra.mxu0 0.0
    %215 = vmatpush.msra.mxu0 0.0
    %216 = vmatpush.msra.mxu0 0.0
    %217 = vmatpush.msra.mxu0 0.0
    %218 = vmatpush.msra.mxu0 0.0
    %219 = vmatpush.msra.mxu0 0.0
    %220 = vmatpush.msra.mxu0 %v182
    %221 = vmatpush.msra.mxu0 %v181
    %222 = vmatpush.msra.mxu0 %v180
    %223 = vmatpush.msra.mxu0 %v179
    %224 = vmatpush.msra.mxu0 %v178
    %225 = vmatpush.msra.mxu0 %v177
    %226 = vmatpush.msra.mxu0 %v176
    %227 = vmatpush.msra.mxu0 %v175
    %228 = vmatmul.f32.gmra.mxu0 %v189
    %v229 = vpop.f32.mrf.mxu0
    %v230 = vadd.f32 %v185, %v229
    %231 = vmatmul.f32.gmra.mxu0 %v192
    %v232 = vpop.f32.mrf.mxu0
    %v233 = vadd.f32 %v185, %v232
    %234 = vmatmul.f32.gmra.mxu0 %v195
    %v235 = vpop.f32.mrf.mxu0
    %v236 = vadd.f32 %v185, %v235
    %237 = vmatmul.f32.gmra.mxu0 %v198
    %v238 = vpop.f32.mrf.mxu0
    %v239 = vadd.f32 %v185, %v238
    %240 = vmatmul.f32.gmra.mxu0 %v201
    %v241 = vpop.f32.mrf.mxu0
    %v242 = vadd.f32 %v185, %v241
    %243 = vmatmul.f32.gmra.mxu0 %v204
    %v244 = vpop.f32.mrf.mxu0
    %v245 = vadd.f32 %v185, %v244
    %246 = vmatmul.f32.gmra.mxu0 %v207
    %v247 = vpop.f32.mrf.mxu0
    %v248 = vadd.f32 %v185, %v247
    %249 = vmatmul.f32.gmra.mxu0 %v210
    %v250 = vpop.f32.mrf.mxu0
    %v251 = vadd.f32 %v185, %v250
    %252 = vdwg.mxu0
    %v253 = vmax.f32 %v230, 0.0
    %v254 = vmax.f32 %v233, 0.0
    %v255 = vmax.f32 %v236, 0.0
    %v256 = vmax.f32 %v239, 0.0
    %v257 = vmax.f32 %v242, 0.0
    %v258 = vmax.f32 %v245, 0.0
    %v259 = vmax.f32 %v248, 0.0
    %v260 = vmax.f32 %v251, 0.0
    %v261 = vld [vmem:[%s5] sm:$0xff]
    %v262 = vld [vmem:[%s5 + $0x8] sm:$0xff]
    %v263 = vld [vmem:[%s6] sm:$0x1]
    %v265 = vperm.slane %v263, 0
    %vm267 = vcmask 130048
    %v269 = vsel %vm267, %v253, 0
    %v272 = vsel %vm267, %v254, 0
    %v275 = vsel %vm267, %v255, 0
    %v278 = vsel %vm267, %v256, 0
    %v281 = vsel %vm267, %v257, 0
    %v284 = vsel %vm267, %v258, 0
    %v287 = vsel %vm267, %v259, 0
    %v290 = vsel %vm267, %v260, 0
    %292 = vmatpush.msra.mxu0 0.0
    %293 = vmatpush.msra.mxu0 0.0
    %294 = vmatpush.msra.mxu0 0.0
    %295 = vmatpush.msra.mxu0 0.0
    %296 = vmatpush.msra.mxu0 0.0
    %297 = vmatpush.msra.mxu0 0.0
    %298 = vmatpush.msra.mxu0 0.0
    %299 = vmatpush.msra.mxu0 0.0
    %300 = vmatpush.msra.mxu0 0.0
    %301 = vmatpush.msra.mxu0 0.0
    %302 = vmatpush.msra.mxu0 0.0
    %303 = vmatpush.msra.mxu0 0.0
    %304 = vmatpush.msra.mxu0 0.0
    %305 = vmatpush.msra.mxu0 0.0
    %306 = vmatpush.msra.mxu0 %v262
    %307 = vmatpush.msra.mxu0 %v261
    %308 = vmatmul.f32.gmra.mxu0 %v269
    %v309 = vpop.f32.mrf.mxu0
    %v310 = vadd.f32 %v265, %v309
    %311 = vmatmul.f32.gmra.mxu0 %v272
    %v312 = vpop.f32.mrf.mxu0
    %v313 = vadd.f32 %v265, %v312
    %314 = vmatmul.f32.gmra.mxu0 %v275
    %v315 = vpop.f32.mrf.mxu0
    %v316 = vadd.f32 %v265, %v315
    %317 = vmatmul.f32.gmra.mxu0 %v278
    %v318 = vpop.f32.mrf.mxu0
    %v319 = vadd.f32 %v265, %v318
    %320 = vmatmul.f32.gmra.mxu0 %v281
    %v321 = vpop.f32.mrf.mxu0
    %v322 = vadd.f32 %v265, %v321
    %323 = vmatmul.f32.gmra.mxu0 %v284
    %v324 = vpop.f32.mrf.mxu0
    %v325 = vadd.f32 %v265, %v324
    %326 = vmatmul.f32.gmra.mxu0 %v287
    %v327 = vpop.f32.mrf.mxu0
    %v328 = vadd.f32 %v265, %v327
    %329 = vmatmul.f32.gmra.mxu0 %v290
    %v330 = vpop.f32.mrf.mxu0
    %v331 = vadd.f32 %v265, %v330
    %332 = vdwg.mxu0
    %v333 = vmax.f32 %v310, 0.0
    %v334 = vmax.f32 %v313, 0.0
    %v335 = vmax.f32 %v316, 0.0
    %v336 = vmax.f32 %v319, 0.0
    %v337 = vmax.f32 %v322, 0.0
    %v338 = vmax.f32 %v325, 0.0
    %v339 = vmax.f32 %v328, 0.0
    %v340 = vmax.f32 %v331, 0.0
    %v341 = vld [vmem:[%s7] sm:$0xff]
    %v342 = vld [vmem:[%s7 + $0x8] sm:$0xff]
    %v343 = vld [vmem:[%s7 + $0x10] sm:$0xff]
    %v344 = vld [vmem:[%s7 + $0x18] sm:$0xff]
    %v345 = vld [vmem:[%s7 + $0x20] sm:$0xff]
    %v346 = vld [vmem:[%s7 + $0x28] sm:$0xff]
    %v347 = vld [vmem:[%s7 + $0x30] sm:$0xff]
    %v348 = vld [vmem:[%s7 + $0x38] sm:$0xff]
    %v349 = vld [vmem:[%s7 + $0x40] sm:$0xff]
    %v350 = vld [vmem:[%s7 + $0x48] sm:$0xff]
    %v351 = vld [vmem:[%s7 + $0x50] sm:$0xff]
    %v352 = vld [vmem:[%s7 + $0x58] sm:$0xff]
    %v353 = vld [vmem:[%s7 + $0x60] sm:$0xff]
    %v354 = vld [vmem:[%s7 + $0x68] sm:$0xff]
    %v355 = vld [vmem:[%s7 + $0x70] sm:$0xff]
    %v356 = vld [vmem:[%s7 + $0x78] sm:$0xff]
    %v357 = vld [vmem:[%s8] sm:$0x3]
    %v359 = vperm.slane %v357, 0
    %v360 = vperm.slane %v357, 1
    %v364 = vsel %vm187, %v333, 0
    %v367 = vsel %vm187, %v334, 0
    %v370 = vsel %vm187, %v335, 0
    %v373 = vsel %vm187, %v336, 0
    %v376 = vsel %vm187, %v337, 0
    %v379 = vsel %vm187, %v338, 0
    %v382 = vsel %vm187, %v339, 0
    %v385 = vsel %vm187, %v340, 0
    %387 = vmatpush.msra.mxu0 0.0
    %388 = vmatpush.msra.mxu0 0.0
    %389 = vmatpush.msra.mxu0 0.0
    %390 = vmatpush.msra.mxu0 0.0
    %391 = vmatpush.msra.mxu0 0.0
    %392 = vmatpush.msra.mxu0 0.0
    %393 = vmatpush.msra.mxu0 0.0
    %394 = vmatpush.msra.mxu0 0.0
    %395 = vmatpush.msra.mxu0 %v355
    %396 = vmatpush.msra.mxu0 %v353
    %397 = vmatpush.msra.mxu0 %v351
    %398 = vmatpush.msra.mxu0 %v349
    %399 = vmatpush.msra.mxu0 %v347
    %400 = vmatpush.msra.mxu0 %v345
    %401 = vmatpush.msra.mxu0 %v343
    %402 = vmatpush.msra.mxu0 %v341
    %403 = vmatmul.f32.gmra.mxu0 %v364
    %v404 = vpop.f32.mrf.mxu0
    %v405 = vadd.f32 %v359, %v404
    %406 = vmatmul.f32.gmra.mxu0 %v367
    %v407 = vpop.f32.mrf.mxu0
    %v408 = vadd.f32 %v359, %v407
    %409 = vmatmul.f32.gmra.mxu0 %v370
    %v410 = vpop.f32.mrf.mxu0
    %v411 = vadd.f32 %v359, %v410
    %412 = vmatmul.f32.gmra.mxu0 %v373
    %v413 = vpop.f32.mrf.mxu0
    %v414 = vadd.f32 %v359, %v413
    %415 = vmatmul.f32.gmra.mxu0 %v376
    %v416 = vpop.f32.mrf.mxu0
    %v417 = vadd.f32 %v359, %v416
    %418 = vmatmul.f32.gmra.mxu0 %v379
    %v419 = vpop.f32.mrf.mxu0
    %v420 = vadd.f32 %v359, %v419
    %421 = vmatmul.f32.gmra.mxu0 %v382
    %v422 = vpop.f32.mrf.mxu0
    %v423 = vadd.f32 %v359, %v422
    %424 = vmatmul.f32.gmra.mxu0 %v385
    %v425 = vpop.f32.mrf.mxu0
    %v426 = vadd.f32 %v359, %v425
    %427 = vdwg.mxu0
    %428 = vmatpush.msra.mxu0 0.0
    %429 = vmatpush.msra.mxu0 0.0
    %430 = vmatpush.msra.mxu0 0.0
    %431 = vmatpush.msra.mxu0 0.0
    %432 = vmatpush.msra.mxu0 0.0
    %433 = vmatpush.msra.mxu0 0.0
    %434 = vmatpush.msra.mxu0 0.0
    %435 = vmatpush.msra.mxu0 0.0
    %436 = vmatpush.msra.mxu0 %v356
    %437 = vmatpush.msra.mxu0 %v354
    %438 = vmatpush.msra.mxu0 %v352
    %439 = vmatpush.msra.mxu0 %v350
    %440 = vmatpush.msra.mxu0 %v348
    %441 = vmatpush.msra.mxu0 %v346
    %442 = vmatpush.msra.mxu0 %v344
    %443 = vmatpush.msra.mxu0 %v342
    %444 = vmatmul.f32.gmra.mxu0 %v364
    %v445 = vpop.f32.mrf.mxu0
    %v446 = vadd.f32 %v360, %v445
    %447 = vmatmul.f32.gmra.mxu0 %v367
    %v448 = vpop.f32.mrf.mxu0
    %v449 = vadd.f32 %v360, %v448
    %450 = vmatmul.f32.gmra.mxu0 %v370
    %v451 = vpop.f32.mrf.mxu0
    %v452 = vadd.f32 %v360, %v451
    %453 = vmatmul.f32.gmra.mxu0 %v373
    %v454 = vpop.f32.mrf.mxu0
    %v455 = vadd.f32 %v360, %v454
    %456 = vmatmul.f32.gmra.mxu0 %v376
    %v457 = vpop.f32.mrf.mxu0
    %v458 = vadd.f32 %v360, %v457
    %459 = vmatmul.f32.gmra.mxu0 %v379
    %v460 = vpop.f32.mrf.mxu0
    %v461 = vadd.f32 %v360, %v460
    %462 = vmatmul.f32.gmra.mxu0 %v382
    %v463 = vpop.f32.mrf.mxu0
    %v464 = vadd.f32 %v360, %v463
    %465 = vmatmul.f32.gmra.mxu0 %v385
    %v466 = vpop.f32.mrf.mxu0
    %v467 = vadd.f32 %v360, %v466
    %468 = vdwg.mxu0
    %v469 = vmax.f32 %v405, 0.0
    %v470 = vmax.f32 %v446, 0.0
    %v471 = vmax.f32 %v408, 0.0
    %v472 = vmax.f32 %v449, 0.0
    %v473 = vmax.f32 %v411, 0.0
    %v474 = vmax.f32 %v452, 0.0
    %v475 = vmax.f32 %v414, 0.0
    %v476 = vmax.f32 %v455, 0.0
    %v477 = vmax.f32 %v417, 0.0
    %v478 = vmax.f32 %v458, 0.0
    %v479 = vmax.f32 %v420, 0.0
    %v480 = vmax.f32 %v461, 0.0
    %v481 = vmax.f32 %v423, 0.0
    %v482 = vmax.f32 %v464, 0.0
    %v483 = vmax.f32 %v426, 0.0
    %v484 = vmax.f32 %v467, 0.0
    %485 = vst [vmem:[#allocation2] sm:$0xff] %v469
    %486 = vst [vmem:[#allocation2 + $0x8] sm:$0xff] %v470
    %487 = vst [vmem:[#allocation2 + $0x10] sm:$0xff] %v471
    %488 = vst [vmem:[#allocation2 + $0x18] sm:$0xff] %v472
    %489 = vst [vmem:[#allocation2 + $0x20] sm:$0xff] %v473
    %490 = vst [vmem:[#allocation2 + $0x28] sm:$0xff] %v474
    %491 = vst [vmem:[#allocation2 + $0x30] sm:$0xff] %v475
    %492 = vst [vmem:[#allocation2 + $0x38] sm:$0xff] %v476
    %493 = vst [vmem:[#allocation2 + $0x40] sm:$0xff] %v477
    %494 = vst [vmem:[#allocation2 + $0x48] sm:$0xff] %v478
    %495 = vst [vmem:[#allocation2 + $0x50] sm:$0xff] %v479
    %496 = vst [vmem:[#allocation2 + $0x58] sm:$0xff] %v480
    %497 = vst [vmem:[#allocation2 + $0x60] sm:$0xff] %v481
    %498 = vst [vmem:[#allocation2 + $0x68] sm:$0xff] %v482
    %499 = vst [vmem:[#allocation2 + $0x70] sm:$0xff] %v483
    %500 = vst [vmem:[#allocation2 + $0x78] sm:$0xff] %v484
    // Predicated region
    $region38: #{vae_plus_bias_forward.1} parent=1 // pred_check
      _
    $region39: #{vae_plus_bias_forward.1} parent=1 // pred_check_branch
      %502 = sbr.rel (0) target = $region41
    $region40: #{vae_plus_bias_forward.1} parent=1 // pred_region
      %504 = vsyncadd [#allocation3], 0
      %s505 = sshll.u32 [#allocation2], 4
      %s506 = int_to_ptr.vmem [resolvable:$true] %s505
      %s507 = sshll.u32 %s9, 4
      %s508 = int_to_ptr.hbm [resolvable:$true] %s507
      %513 = dma.vmem_to_hbm [thread:$0]  %s506, 2048, %s508, [#allocation3], 256, 256, 16
    $region41: #{vae_plus_bias_forward.1} parent=1 // pred_fallthru
      _
    // Predicated region
    $region42: #{vae_plus_bias_forward.1} parent=1 // pred_check
      _
    $region43: #{vae_plus_bias_forward.1} parent=1 // pred_check_branch
      %515 = sbr.rel (0) target = $region45
    $region44: #{vae_plus_bias_forward.1} parent=1 // pred_region
      %517 = dma.done [#allocation3], 2048
    $region45: #{vae_plus_bias_forward.1} parent=1 // pred_fallthru
      _
    %518 = vsyncpa [#allocation3], 1

</llo_original>
